<compile_context>
chip_gen: v5e
topology: v5e:2x2
jax: 0.10.0
libtpu: 0.0.40
codegen_flags: <defaults>
</compile_context>

<pallas_src>
import jax
import jax.numpy as jnp
import numpy as np
from jax.experimental import pallas as pl
from jax.experimental.pallas import tpu as pltpu


# ----------------------------------------------------------------------------- kernel
def basic_block_kernel(x_ref, a1_ref, a2_ref, bn_ref, out_ref):
    # x_ref:   (Nb, H, WC) f32   lane-dense activations (channels-last, W*C on lanes)
    # a*_ref:  (3*WC, WC) bf16   banded conv matrices, the 3 dy taps stacked along K
    # bn_ref:  (4, WC)  f32      rows: scale1, bias1, scale2, bias2 (folded BN)
    # out_ref: (Nb, H, WC) f32
    Nb, H, WC = x_ref.shape
    M = Nb * H
    x = x_ref[...].reshape(M, WC)            # free: leading-dim merge (H % 8 == 0)

    # Per-image top/bottom masks so the sublane roll can't leak across batch elements.
    row_in_img = jax.lax.broadcasted_iota(jnp.int32, (Nb, H, WC), 1).reshape(M, WC)
    not_top = row_in_img > 0
    not_bot = row_in_img < H - 1

    def conv3x3(act_f32, a_ref):
        # dy = 0 / 2 taps need rows h-1 / h+1: masked XLU sublane rolls (no scratch,
        # no slices).  dx shift + Cin->Cout mixing live inside the banded matrices.
        up = jnp.where(not_top, pltpu.roll(act_f32, shift=1, axis=0), 0.0)       # row h-1
        dn = jnp.where(not_bot, pltpu.roll(act_f32, shift=M - 1, axis=0), 0.0)   # row h+1
        taps = jnp.concatenate([up, act_f32, dn], axis=1).astype(jnp.bfloat16)   # (M, 3*WC)
        # Single deep-K MXU matmul (K = 3*WC = 384), f32 accumulation inside the MXU.
        return jnp.dot(taps, a_ref[...], preferred_element_type=jnp.float32)

    s1, b1, s2, b2 = bn_ref[0], bn_ref[1], bn_ref[2], bn_ref[3]

    # conv1 -> BN1 (folded) -> ReLU          (epilogue kept in f32; v5e has no bf16 VPU)
    out1 = jnp.maximum(conv3x3(x, a1_ref) * s1 + b1, 0.0)
    # conv2 -> BN2 (folded) -> + identity residual -> ReLU
    out2 = conv3x3(out1, a2_ref) * s2 + b2
    out_ref[...] = jnp.maximum(out2 + x, 0.0).reshape(Nb, H, WC)


# --------------------------------------------------------------------------- wrappers
def _banded_conv_matrices(w_hwio, W):
    """(3, 3, Cin, Cout) HWIO weights -> (3*W*Cin, W*Cout), dy taps stacked along K.

    A[dy*W*Cin + wi*Cin + ci, wo*Cout + co] = w[dy, dx, ci, co]  with wi = wo + dx - 1;
    out-of-range wi taps are simply absent, reproducing SAME zero padding along W.
    """
    _, _, cin, cout = w_hwio.shape
    mats = []
    for dy in range(3):
        a = jnp.zeros((W * cin, W * cout), jnp.float32)
        for dx in range(3):
            shift = jnp.eye(W, W, k=1 - dx, dtype=jnp.float32)   # S[wi,wo]=1 iff wi==wo+dx-1
            a = a + jnp.kron(shift, w_hwio[dy, dx])
        mats.append(a)
    return jnp.concatenate(mats, axis=0)                          # (3*W*cin, W*cout)


def _fold_bn(bn, W, eps):
    g, b, m, v = bn
    s = g / jnp.sqrt(v + eps)
    # tile per-channel scale/bias across W -> lane-dense (W*C,) f32 vectors
    return jnp.tile(s, W), jnp.tile(b - m * s, W)


def _pick_block_batch(N, H, target_m=256):
    """Largest divisor Nb of N with Nb*H <= target_m, keeping >= 2 grid steps when N >= 2
    (so both v7x TensorCores get work).  Requires H % 8 == 0 for a free in-kernel merge."""
    if H % 8 != 0:
        return 1
    best = 1
    for nb in range(1, N + 1):
        if N % nb:
            continue
        if nb * H > target_m:
            continue
        if N >= 2 and N // nb < 2:
            continue
        best = nb
    return best


def basic_block_apply(x_flat, a1_cat, a2_cat, bn_pack, *, block_batch=None):
    """Core lane-dense entry point: x_flat is (N, H, W*C) f32.
    Stacked BasicBlocks should chain this directly (no per-block NCHW round trip)."""
    N, H, WC = x_flat.shape
    assert WC % 128 == 0, "lane axis (W*C) must be a multiple of 128"
    # TODO(synk): at real ResNet widths (W*C >~ 512) the (3*W*C, W*C) banded matrices blow
    # past VMEM (~73 MiB bf16 at W*C=3584 > v7x's 64 MiB); switch to per-dx (C,C) weights
    # plus a lane-axis pltpu.roll(+-C), or tile the banded K axis with an 'arbitrary' axis.
    Nb = block_batch if block_batch is not None else _pick_block_batch(N, H)
    assert N % Nb == 0

    return pl.pallas_call(
        basic_block_kernel,
        out_shape=jax.ShapeDtypeStruct((N, H, WC), jnp.float32),
        grid_spec=pltpu.PrefetchScalarGridSpec(
            num_scalar_prefetch=0,
            grid=(N // Nb,),
            in_specs=[
                pl.BlockSpec((Nb, H, WC), lambda n: (n, 0, 0)),
                pl.BlockSpec((3 * WC, WC), lambda n: (0, 0)),
                pl.BlockSpec((3 * WC, WC), lambda n: (0, 0)),
                pl.BlockSpec((4, WC), lambda n: (0, 0)),
            ],
            out_specs=pl.BlockSpec((Nb, H, WC), lambda n: (n, 0, 0)),
        ),
        compiler_params=pltpu.CompilerParams(
            dimension_semantics=("parallel",)),     # batch tiles shard across TCs on v7x
    )(x_flat, a1_cat, a2_cat, bn_pack)


def basic_block_forward(x_nchw, w1_hwio, w2_hwio, bn1, bn2, eps=1e-5, block_batch=None):
    """Convenience NCHW wrapper (stride=1, inplanes==planes, no downsample, eval-mode BN).
    For a stack of blocks, do this layout conversion once and chain basic_block_apply."""
    N, C, H, W = x_nchw.shape
    WC = W * C

    # NCHW -> (N, H, W*C): channels-last, flattened so the lane axis is W*C.
    x_flat = jnp.transpose(x_nchw, (0, 2, 3, 1)).reshape(N, H, WC)

    a1 = _banded_conv_matrices(w1_hwio, W).astype(jnp.bfloat16)     # (3*WC, WC) bf16
    a2 = _banded_conv_matrices(w2_hwio, W).astype(jnp.bfloat16)

    s1, b1 = _fold_bn(bn1, W, eps)
    s2, b2 = _fold_bn(bn2, W, eps)
    bn_pack = jnp.stack([s1, b1, s2, b2])                           # (4, WC) f32

    out_flat = basic_block_apply(x_flat, a1, a2, bn_pack, block_batch=block_batch)
    return jnp.transpose(out_flat.reshape(N, H, W, C), (0, 3, 1, 2))


# -------------------------------------------------------------------------- reference
def basic_block_reference(x_nchw, w1, w2, bn1, bn2, eps=1e-5, matmul_dtype=jnp.float32):
    """Pure-JAX reference (PyTorch BasicBlock, eval-mode BN).  matmul_dtype lets us
    reproduce the kernel's bf16 MXU operand rounding for a tight comparison."""
    x = jnp.transpose(x_nchw, (0, 2, 3, 1))

    def conv(a, w):
        a = a.astype(matmul_dtype).astype(jnp.float32)
        w = w.astype(matmul_dtype).astype(jnp.float32)
        return jax.lax.conv_general_dilated(
            a, w, window_strides=(1, 1), padding="SAME",
            dimension_numbers=("NHWC", "HWIO", "NHWC"))

    def bn(a, p):
        g, b, m, v = p
        return (a - m) / jnp.sqrt(v + eps) * g + b

    o = jnp.maximum(bn(conv(x, w1), bn1), 0.0)
    o = bn(conv(o, w2), bn2)
    o = jnp.maximum(o + x, 0.0)
    return jnp.transpose(o, (0, 3, 1, 2))


# -------------------------------------------------------------------------------- main
if __name__ == "__main__":
    # inplanes == planes, stride=1; W*C == 128 (lane-dense); Nb=2 -> grid=(2,), M=32.
    N, C, H, W = 4, 8, 16, 16

    key = jax.random.PRNGKey(0)
    keys = jax.random.split(key, 11)
    std = (2.0 / (9 * C)) ** 0.5  # kaiming-ish
    w1 = jax.random.normal(keys[0], (3, 3, C, C), jnp.float32) * std  # HWIO
    w2 = jax.random.normal(keys[1], (3, 3, C, C), jnp.float32) * std  # HWIO

    bn1 = (1.0 + 0.1 * jax.random.normal(keys[2], (C,), jnp.float32),   # gamma
           0.1 * jax.random.normal(keys[3], (C,), jnp.float32),         # beta
           0.1 * jax.random.normal(keys[4], (C,), jnp.float32),         # running_mean
           1.0 + 0.1 * jax.random.uniform(keys[5], (C,), jnp.float32))  # running_var
    bn2 = (1.0 + 0.1 * jax.random.normal(keys[6], (C,), jnp.float32),
           0.1 * jax.random.normal(keys[7], (C,), jnp.float32),
           0.1 * jax.random.normal(keys[8], (C,), jnp.float32),
           1.0 + 0.1 * jax.random.uniform(keys[9], (C,), jnp.float32))

    x = jax.random.normal(keys[10], (N, C, H, W), jnp.float32)

    out = jax.block_until_ready(basic_block_forward(x, w1, w2, bn1, bn2))

    # Tight check vs. a reference that uses the same bf16 matmul-operand rounding.
    ref_bf16 = jax.block_until_ready(
        basic_block_reference(x, w1, w2, bn1, bn2, matmul_dtype=jnp.bfloat16))
    np.testing.assert_allclose(np.asarray(out), np.asarray(ref_bf16),
                               rtol=2e-3, atol=2e-3)

    # Looser sanity check vs. the exact f32 reference (bound set by bf16 operand precision).
    ref_f32 = jax.block_until_ready(basic_block_reference(x, w1, w2, bn1, bn2))
    np.testing.assert_allclose(np.asarray(out), np.asarray(ref_f32),
                               rtol=3e-2, atol=3e-2)

    print("KERNEL_OK")
</pallas_src>

<mosaic_0001>
module attributes {stable_mosaic.version = 11 : i64} {
  func.func @basic_block_kernel(%arg0: i32, %arg1: memref<2x16x128xf32, #tpu.memory_space<vmem>>, %arg2: memref<384x128xbf16, #tpu.memory_space<vmem>>, %arg3: memref<384x128xbf16, #tpu.memory_space<vmem>>, %arg4: memref<4x128xf32, #tpu.memory_space<vmem>>, %arg5: memref<2x16x128xf32, #tpu.memory_space<vmem>>) attributes {dimension_semantics = [#tpu.dimension_semantics<parallel>], iteration_bounds = array<i64: 2>, scalar_prefetch = 0 : i64, scratch_operands = 0 : i64, tpu.core_type = #tpu.core_type<tc>, window_params = [{transform_indices = @transform_0, window_bounds = array<i64: 2, 16, 128>}, {pipeline_mode = #tpu.pipeline_mode<synchronous>, transform_indices = @transform_1, window_bounds = array<i64: 384, 128>}, {pipeline_mode = #tpu.pipeline_mode<synchronous>, transform_indices = @transform_2, window_bounds = array<i64: 384, 128>}, {pipeline_mode = #tpu.pipeline_mode<synchronous>, transform_indices = @transform_3, window_bounds = array<i64: 4, 128>}, {transform_indices = @transform_4, window_bounds = array<i64: 2, 16, 128>}]} {
    %c0 = arith.constant 0 : index
    %c0_0 = arith.constant 0 : index
    %c0_1 = arith.constant 0 : index
    %0 = vector.load %arg1[%c0, %c0_0, %c0_1] : memref<2x16x128xf32, #tpu.memory_space<vmem>>, vector<2x16x128xf32>
    %1 = vector.shape_cast %0 : vector<2x16x128xf32> to vector<32x128xf32>
    %2 = tpu.iota {dimensions = array<i32: 1>} : vector<2x16x128xi32>
    %3 = vector.shape_cast %2 : vector<2x16x128xi32> to vector<32x128xi32>
    %c0_i32 = arith.constant 0 : i32
    %4 = vector.broadcast %c0_i32 : i32 to vector<32x128xi32>
    %5 = arith.cmpi sgt, %3, %4 : vector<32x128xi32>
    %c15_i32 = arith.constant 15 : i32
    %6 = vector.broadcast %c15_i32 : i32 to vector<32x128xi32>
    %7 = arith.cmpi slt, %3, %6 : vector<32x128xi32>
    %c0_2 = arith.constant 0 : index
    %c0_3 = arith.constant 0 : index
    %8 = vector.load %arg4[%c0_2, %c0_3] : memref<4x128xf32, #tpu.memory_space<vmem>>, vector<1x128xf32>
    %9 = vector.shape_cast %8 : vector<1x128xf32> to vector<128xf32>
    %c1 = arith.constant 1 : index
    %c0_4 = arith.constant 0 : index
    %10 = vector.load %arg4[%c1, %c0_4] : memref<4x128xf32, #tpu.memory_space<vmem>>, vector<1x128xf32>
    %11 = vector.shape_cast %10 : vector<1x128xf32> to vector<128xf32>
    %c2 = arith.constant 2 : index
    %c0_5 = arith.constant 0 : index
    %12 = vector.load %arg4[%c2, %c0_5] : memref<4x128xf32, #tpu.memory_space<vmem>>, vector<1x128xf32>
    %13 = vector.shape_cast %12 : vector<1x128xf32> to vector<128xf32>
    %c3 = arith.constant 3 : index
    %c0_6 = arith.constant 0 : index
    %14 = vector.load %arg4[%c3, %c0_6] : memref<4x128xf32, #tpu.memory_space<vmem>>, vector<1x128xf32>
    %15 = vector.shape_cast %14 : vector<1x128xf32> to vector<128xf32>
    %c1_i32 = arith.constant 1 : i32
    %16 = tpu.dynamic_rotate %1 by %c1_i32 dim 0 : vector<32x128xf32>, i32 -> vector<32x128xf32>
    %cst = arith.constant 0.000000e+00 : f32
    %17 = vector.broadcast %cst : f32 to vector<32x128xf32>
    %18 = arith.select %5, %16, %17 : vector<32x128xi1>, vector<32x128xf32>
    %c31_i32 = arith.constant 31 : i32
    %19 = tpu.dynamic_rotate %1 by %c31_i32 dim 0 : vector<32x128xf32>, i32 -> vector<32x128xf32>
    %cst_7 = arith.constant 0.000000e+00 : f32
    %20 = vector.broadcast %cst_7 : f32 to vector<32x128xf32>
    %21 = arith.select %7, %19, %20 : vector<32x128xi1>, vector<32x128xf32>
    %22 = tpu.concatenate %18, %1, %21 in 1 : vector<32x128xf32>, vector<32x128xf32>, vector<32x128xf32> -> vector<32x384xf32>
    %23 = arith.truncf %22 : vector<32x384xf32> to vector<32x384xbf16>
    %c0_8 = arith.constant 0 : index
    %c0_9 = arith.constant 0 : index
    %24 = vector.load %arg2[%c0_8, %c0_9] : memref<384x128xbf16, #tpu.memory_space<vmem>>, vector<384x128xbf16>
    %cst_10 = arith.constant dense<0.000000e+00> : vector<32x128xf32>
    %25 = tpu.matmul %23, %24, %cst_10 {dimension_numbers = #tpu.dot_dimension_numbers<[1], [0], [0], [1], [0, 0, 1, 1], [], []>} : vector<32x384xbf16>, vector<384x128xbf16>, vector<32x128xf32> -> vector<32x128xf32>
    %26 = vector.shape_cast %9 : vector<128xf32> to vector<1x128xf32>
    %27 = vector.broadcast %26 : vector<1x128xf32> to vector<32x128xf32>
    %28 = arith.mulf %25, %27 : vector<32x128xf32>
    %29 = vector.shape_cast %11 : vector<128xf32> to vector<1x128xf32>
    %30 = vector.broadcast %29 : vector<1x128xf32> to vector<32x128xf32>
    %31 = arith.addf %28, %30 : vector<32x128xf32>
    %cst_11 = arith.constant 0.000000e+00 : f32
    %32 = vector.broadcast %cst_11 : f32 to vector<32x128xf32>
    %33 = arith.maximumf %31, %32 : vector<32x128xf32>
    %c1_i32_12 = arith.constant 1 : i32
    %34 = tpu.dynamic_rotate %33 by %c1_i32_12 dim 0 : vector<32x128xf32>, i32 -> vector<32x128xf32>
    %cst_13 = arith.constant 0.000000e+00 : f32
    %35 = vector.broadcast %cst_13 : f32 to vector<32x128xf32>
    %36 = arith.select %5, %34, %35 : vector<32x128xi1>, vector<32x128xf32>
    %c31_i32_14 = arith.constant 31 : i32
    %37 = tpu.dynamic_rotate %33 by %c31_i32_14 dim 0 : vector<32x128xf32>, i32 -> vector<32x128xf32>
    %cst_15 = arith.constant 0.000000e+00 : f32
    %38 = vector.broadcast %cst_15 : f32 to vector<32x128xf32>
    %39 = arith.select %7, %37, %38 : vector<32x128xi1>, vector<32x128xf32>
    %40 = tpu.concatenate %36, %33, %39 in 1 : vector<32x128xf32>, vector<32x128xf32>, vector<32x128xf32> -> vector<32x384xf32>
    %41 = arith.truncf %40 : vector<32x384xf32> to vector<32x384xbf16>
    %c0_16 = arith.constant 0 : index
    %c0_17 = arith.constant 0 : index
    %42 = vector.load %arg3[%c0_16, %c0_17] : memref<384x128xbf16, #tpu.memory_space<vmem>>, vector<384x128xbf16>
    %cst_18 = arith.constant dense<0.000000e+00> : vector<32x128xf32>
    %43 = tpu.matmul %41, %42, %cst_18 {dimension_numbers = #tpu.dot_dimension_numbers<[1], [0], [0], [1], [0, 0, 1, 1], [], []>} : vector<32x384xbf16>, vector<384x128xbf16>, vector<32x128xf32> -> vector<32x128xf32>
    %44 = vector.shape_cast %13 : vector<128xf32> to vector<1x128xf32>
    %45 = vector.broadcast %44 : vector<1x128xf32> to vector<32x128xf32>
    %46 = arith.mulf %43, %45 : vector<32x128xf32>
    %47 = vector.shape_cast %15 : vector<128xf32> to vector<1x128xf32>
    %48 = vector.broadcast %47 : vector<1x128xf32> to vector<32x128xf32>
    %49 = arith.addf %46, %48 : vector<32x128xf32>
    %50 = arith.addf %49, %1 : vector<32x128xf32>
    %cst_19 = arith.constant 0.000000e+00 : f32
    %51 = vector.broadcast %cst_19 : f32 to vector<32x128xf32>
    %52 = arith.maximumf %50, %51 : vector<32x128xf32>
    %53 = vector.shape_cast %52 : vector<32x128xf32> to vector<2x16x128xf32>
    %c0_20 = arith.constant 0 : index
    %c0_21 = arith.constant 0 : index
    %c0_22 = arith.constant 0 : index
    %54 = vector.load %arg5[%c0_20, %c0_21, %c0_22] : memref<2x16x128xf32, #tpu.memory_space<vmem>>, vector<2x16x128xf32>
    tpu.vector_store %arg5[%c0_20, %c0_21, %c0_22], %53 {strides = array<i32>} : memref<2x16x128xf32, #tpu.memory_space<vmem>>, vector<2x16x128xf32>,
    return
  }
  func.func @transform_0(%arg0: i32) -> (i32, i32, i32) {
    %c0_i32 = arith.constant 0 : i32
    %c0_i32_0 = arith.constant 0 : i32
    %c0_i32_1 = arith.constant 0 : i32
    return %arg0, %c0_i32, %c0_i32_0 : i32, i32, i32
  }
  func.func @transform_1(%arg0: i32) -> (i32, i32) {
    %c0_i32 = arith.constant 0 : i32
    %c0_i32_0 = arith.constant 0 : i32
    %c0_i32_1 = arith.constant 0 : i32
    return %c0_i32, %c0_i32_0 : i32, i32
  }
  func.func @transform_2(%arg0: i32) -> (i32, i32) {
    %c0_i32 = arith.constant 0 : i32
    %c0_i32_0 = arith.constant 0 : i32
    %c0_i32_1 = arith.constant 0 : i32
    return %c0_i32, %c0_i32_0 : i32, i32
  }
  func.func @transform_3(%arg0: i32) -> (i32, i32) {
    %c0_i32 = arith.constant 0 : i32
    %c0_i32_0 = arith.constant 0 : i32
    %c0_i32_1 = arith.constant 0 : i32
    return %c0_i32, %c0_i32_0 : i32, i32
  }
  func.func @transform_4(%arg0: i32) -> (i32, i32, i32) {
    %c0_i32 = arith.constant 0 : i32
    %c0_i32_0 = arith.constant 0 : i32
    %c0_i32_1 = arith.constant 0 : i32
    return %arg0, %c0_i32, %c0_i32_0 : i32, i32, i32
  }
}

</mosaic_0001>

<llo_original>
// kernel: tpu_custom_call.1
$region0: #{tpu_custom_call.1}
  #allocation0 [shape = 'u32[]', space=smem, size = 0x4, offset = 0x4, fixed_abs, tag = 'smem constant byte address 0x4 - core index']
  #allocation1 [shape = 'u32[72,128]{1,0:T(1,128)}', space=vmem, size = 0x9000, scoped, tag = 'internal scratch']
  %s0 = inlined_call_operand.hbm [shape: f32[4,16,128], index: 0, kind: input, shape index: {}]
  %s1 = inlined_call_operand.hbm [shape: bf16[384,128], index: 1, kind: input, shape index: {}]
  %s2 = inlined_call_operand.hbm [shape: bf16[384,128], index: 2, kind: input, shape index: {}]
  %s3 = inlined_call_operand.hbm [shape: f32[4,128], index: 3, kind: input, shape index: {}]
  %s4 = inlined_call_operand.hbm [shape: f32[4,16,128], index: 4, kind: output, shape index: {}]
  %s5 = sld [smem:[#allocation0]]
  $region65: #{tpu_custom_call.1} parent=0
    _
  %s7 = ssub.s32 1, %s5
  %s8 = scalar_select 0, %s7, %s5
  $region1: #{tpu_custom_call.1} parent=0
    #allocation2 [shape = 'u8[32768]{0}', space=vmem, size = 0x8000, scoped, tag = 'input window, operand 0']
    #allocation3 [shape = 's32[2]{0}', space=sflag, size = 0x8, scoped, tag = 'scoped memory for tpu_custom_call.1']
    #allocation4 [shape = 's32[2]{0}', space=sflag, size = 0x8, scoped, tag = 'scoped memory for tpu_custom_call.1']
    #allocation5 [shape = 'u8[98304]{0}', space=vmem, size = 0x18000, scoped, tag = 'input window, operand 1, single buffered']
    #allocation6 [shape = 's32[1]{0}', space=sflag, size = 0x4, scoped, tag = 'scoped memory for tpu_custom_call.1']
    #allocation7 [shape = 'u8[98304]{0}', space=vmem, size = 0x18000, scoped, tag = 'input window, operand 2, single buffered']
    #allocation8 [shape = 'u8[2048]{0}', space=vmem, size = 0x800, scoped, tag = 'input window, operand 3, single buffered']
    #allocation9 [shape = 's32[1]{0}', space=sflag, size = 0x4, scoped, tag = 'scoped memory for tpu_custom_call.1']
    #allocation10 [shape = 'u8[32768]{0}', space=vmem, size = 0x8000, scoped, tag = 'output window, operand 0']
    %9 = vsyncpa [#allocation3], 0
    %s10 = scalar_lea.sflag [#allocation3], 1
    %11 = vsyncpa %s10, 0
    %12 = vsyncpa [#allocation6], 0
    %13 = vsyncpa [#allocation9], 0
    %14 = vsyncpa [#allocation4], 0
    %s15 = scalar_lea.sflag [#allocation4], 1
    %16 = vsyncpa %s15, 0
    loop: start=0, step=1, limit=4
    $region2: #{tpu_custom_call.1} parent=1 // loop_pre_header
      _
    $region3: #{tpu_custom_call.1} parent=1 // loop_header
      %s18 = sphi 0, %s22
      %p19 = scmp.ge.s32.totalorder %s18, 4
      %s28 = sphi 0, %s30
      %s31 = sphi 0, %s28
      %s32 = sphi 0, %s31
      %s48 = sphi 0, %s32
      %s52 = sphi 0, %s52
      %s54 = sphi 0, %s52
      %s55 = sphi 0, %s54
      %s69 = sphi 0, %s55
      %s73 = sphi 0, %s73
      %s75 = sphi 0, %s73
      %s76 = sphi 0, %s75
      %s90 = sphi 0, %s76
      %s94 = sphi 0, %s94
      %s96 = sphi 0, %s94
      %s97 = sphi 0, %s96
      %s111 = sphi 0, %s97
      %s117 = sphi 0, %s119
      %s120 = sphi 0, %s117
      %s121 = sphi 0, %s120
      %s137 = sphi 0, %s121
    $region4: #{tpu_custom_call.1} parent=1 // loop_header_branch
      %21 = sbr.rel (%p19) target = $region8
    $region5: #{tpu_custom_call.1} parent=1 // loop_body
      %s23 = ssub.s32 %s18, 1
      %s24 = ssub.s32 %s18, 2
      %s25 = sadd.s32 %s18, 1
      %s26 = ssub.s32 %s18, %s25
      %p27 = scmp.eq.s32.totalorder %s26, 0
      %s29 = sadd.s32 %s28, 1
      %s30 = scalar_select %p27, %s28, %s29
      %p33 = pneg %p27
      %p34 = scmp.eq.s32.totalorder %s18, 1
      %p35 = por %p33, %p34
      %p36 = scmp.ne.s32.totalorder %s28, %s31
      %p37 = scmp.eq.s32.totalorder %s18, 0
      %p38 = por %p36, %p37
      %p39 = scmp.ne.s32.totalorder %s28, %s31
      %p40 = scmp.eq.s32.totalorder %s23, 1
      %p41 = por %p39, %p40
      %p42 = scmp.ne.s32.totalorder %s31, %s32
      %p43 = scmp.eq.s32.totalorder %s23, 0
      %p44 = por %p42, %p43
      %p45 = scmp.ne.s32.totalorder %s31, %s32
      %p46 = scmp.eq.s32.totalorder %s24, 1
      %p47 = por %p45, %p46
      %p49 = scmp.ne.s32.totalorder %s32, %s48
      %p50 = scmp.eq.s32.totalorder %s24, 0
      %p51 = por %p49, %p50
      %s53 = sadd.s32 %s52, 1
      %p56 = scmp.eq.s32.totalorder %s18, 1
      %p57 = scmp.ne.s32.totalorder %s52, %s54
      %p58 = scmp.eq.s32.totalorder %s18, 0
      %p59 = por %p57, %p58
      %p60 = scmp.ne.s32.totalorder %s52, %s54
      %p61 = scmp.eq.s32.totalorder %s23, 1
      %p62 = por %p60, %p61
      %p63 = scmp.ne.s32.totalorder %s54, %s55
      %p64 = scmp.eq.s32.totalorder %s23, 0
      %p65 = por %p63, %p64
      %p66 = scmp.ne.s32.totalorder %s54, %s55
      %p67 = scmp.eq.s32.totalorder %s24, 1
      %p68 = por %p66, %p67
      %p70 = scmp.ne.s32.totalorder %s55, %s69
      %p71 = scmp.eq.s32.totalorder %s24, 0
      %p72 = por %p70, %p71
      %s74 = sadd.s32 %s73, 1
      %p77 = scmp.eq.s32.totalorder %s18, 1
      %p78 = scmp.ne.s32.totalorder %s73, %s75
      %p79 = scmp.eq.s32.totalorder %s18, 0
      %p80 = por %p78, %p79
      %p81 = scmp.ne.s32.totalorder %s73, %s75
      %p82 = scmp.eq.s32.totalorder %s23, 1
      %p83 = por %p81, %p82
      %p84 = scmp.ne.s32.totalorder %s75, %s76
      %p85 = scmp.eq.s32.totalorder %s23, 0
      %p86 = por %p84, %p85
      %p87 = scmp.ne.s32.totalorder %s75, %s76
      %p88 = scmp.eq.s32.totalorder %s24, 1
      %p89 = por %p87, %p88
      %p91 = scmp.ne.s32.totalorder %s76, %s90
      %p92 = scmp.eq.s32.totalorder %s24, 0
      %p93 = por %p91, %p92
      %s95 = sadd.s32 %s94, 1
      %p98 = scmp.eq.s32.totalorder %s18, 1
      %p99 = scmp.ne.s32.totalorder %s94, %s96
      %p100 = scmp.eq.s32.totalorder %s18, 0
      %p101 = por %p99, %p100
      %p102 = scmp.ne.s32.totalorder %s94, %s96
      %p103 = scmp.eq.s32.totalorder %s23, 1
      %p104 = por %p102, %p103
      %p105 = scmp.ne.s32.totalorder %s96, %s97
      %p106 = scmp.eq.s32.totalorder %s23, 0
      %p107 = por %p105, %p106
      %p108 = scmp.ne.s32.totalorder %s96, %s97
      %p109 = scmp.eq.s32.totalorder %s24, 1
      %p110 = por %p108, %p109
      %p112 = scmp.ne.s32.totalorder %s97, %s111
      %p113 = scmp.eq.s32.totalorder %s24, 0
      %p114 = por %p112, %p113
      %s115 = ssub.s32 %s18, %s25
      %p116 = scmp.eq.s32.totalorder %s115, 0
      %s118 = sadd.s32 %s117, 1
      %s119 = scalar_select %p116, %s117, %s118
      %p122 = pneg %p116
      %p123 = scmp.eq.s32.totalorder %s18, 1
      %p124 = por %p122, %p123
      %p125 = scmp.ne.s32.totalorder %s117, %s120
      %p126 = scmp.eq.s32.totalorder %s18, 0
      %p127 = por %p125, %p126
      %p128 = scmp.ne.s32.totalorder %s117, %s120
      %p129 = scmp.eq.s32.totalorder %s23, 1
      %p130 = por %p128, %p129
      %p131 = scmp.ne.s32.totalorder %s120, %s121
      %p132 = scmp.eq.s32.totalorder %s23, 0
      %p133 = por %p131, %p132
      %p134 = scmp.ne.s32.totalorder %s120, %s121
      %p135 = scmp.eq.s32.totalorder %s24, 1
      %p136 = por %p134, %p135
      %p138 = scmp.ne.s32.totalorder %s121, %s137
      %p139 = scmp.eq.s32.totalorder %s24, 0
      %p140 = por %p138, %p139
      %p141 = scmp.le.s32.totalorder 1, %s18
      %p142 = scmp.lt.s32.totalorder %s18, 3
      %p143 = pnand %p141, %p142
      %p144 = pneg %p143
      // Predicated region
      $region9: #{tpu_custom_call.1} parent=5 // pred_check
        _
      $region10: #{tpu_custom_call.1} parent=5 // pred_check_branch
        %146 = sbr.rel (%p143) target = $region12
      $region11: #{tpu_custom_call.1} parent=5 // pred_region
        %s147 = ssub.s32 %s18, 1
        // Predicated region
        $region13: #{tpu_custom_call.1} parent=11 // pred_check
          %p148 = pneg %p65
        $region14: #{tpu_custom_call.1} parent=11 // pred_check_branch
          %150 = sbr.rel (%p148) target = $region16
        $region15: #{tpu_custom_call.1} parent=11 // pred_region
          %152 = vsyncadd [#allocation6], 0
          %s153 = sshll.u32 %s1, 4
          %s154 = int_to_ptr.hbm [resolvable:$true] %s153
          %s155 = sshll.u32 [#allocation5], 4
          %s156 = int_to_ptr.vmem [resolvable:$true] %s155
          %161 = dma.hbm_to_vmem [thread:$0]  %s154, 3072, %s156, [#allocation6], 64, 64, 4
        $region16: #{tpu_custom_call.1} parent=11 // pred_fallthru
          _
        // Predicated region
        $region17: #{tpu_custom_call.1} parent=11 // pred_check
          %p162 = pneg %p86
        $region18: #{tpu_custom_call.1} parent=11 // pred_check_branch
          %164 = sbr.rel (%p162) target = $region20
        $region19: #{tpu_custom_call.1} parent=11 // pred_region
          %166 = vsyncadd [#allocation6], 0
          %s167 = sshll.u32 %s2, 4
          %s168 = int_to_ptr.hbm [resolvable:$true] %s167
          %s169 = sshll.u32 [#allocation7], 4
          %s170 = int_to_ptr.vmem [resolvable:$true] %s169
          %175 = dma.hbm_to_vmem [thread:$0]  %s168, 3072, %s170, [#allocation6], 64, 64, 4
        $region20: #{tpu_custom_call.1} parent=11 // pred_fallthru
          _
        // Predicated region
        $region21: #{tpu_custom_call.1} parent=11 // pred_check
          %p176 = pneg %p107
        $region22: #{tpu_custom_call.1} parent=11 // pred_check_branch
          %178 = sbr.rel (%p176) target = $region24
        $region23: #{tpu_custom_call.1} parent=11 // pred_region
          %180 = vsyncadd [#allocation9], 0
          %s182 = sshll.u32 %s3, 4
          %s183 = int_to_ptr.hbm [resolvable:$true] %s182
          %s184 = sshll.u32 [#allocation8], 4
          %s185 = int_to_ptr.vmem [resolvable:$true] %s184
          %187 = dma.hbm_to_vmem [thread:$0]  %s183, 64, %s185, [#allocation9]
        $region24: #{tpu_custom_call.1} parent=11 // pred_fallthru
          _
      $region12: #{tpu_custom_call.1} parent=5 // pred_fallthru
        _
      %p188 = scmp.lt.s32.totalorder %s18, 2
      // Predicated region
      $region25: #{tpu_custom_call.1} parent=5 // pred_check
        %p189 = pneg %p188
      $region26: #{tpu_custom_call.1} parent=5 // pred_check_branch
        %191 = sbr.rel (%p189) target = $region28
      $region27: #{tpu_custom_call.1} parent=5 // pred_region
        // Predicated region
        $region29: #{tpu_custom_call.1} parent=27 // pred_check
          %p192 = pneg %p38
        $region30: #{tpu_custom_call.1} parent=27 // pred_check_branch
          %194 = sbr.rel (%p192) target = $region32
        $region31: #{tpu_custom_call.1} parent=27 // pred_region
          %s195 = sand.u32 %s28, 1
          %s196 = scalar_lea.sflag [#allocation3], %s195
          %s197 = sand.u32 %s28, 1
          %s198 = smul.addr %s197, 32
          %s199 = scalar_lea.vmem [#allocation2], %s198
          %s200 = smul.u32 2, %s18
          %202 = vsyncadd %s196, 0
          %s203 = smul.addr %s200, 2
          %s204 = smul.addr %s203, 8
          %s205 = scalar_lea.hbm %s0, %s204
          %s206 = sshll.u32 %s205, 4
          %s207 = int_to_ptr.hbm [resolvable:$true] %s206
          %s208 = sshll.u32 %s199, 4
          %s209 = int_to_ptr.vmem [resolvable:$true] %s208
          %214 = dma.hbm_to_vmem [thread:$0]  %s207, 512, %s209, %s196, 128, 128, 8
        $region32: #{tpu_custom_call.1} parent=27 // pred_fallthru
          _
      $region28: #{tpu_custom_call.1} parent=5 // pred_fallthru
        _
      %p215 = scmp.le.s32.totalorder 1, %s18
      %p216 = scmp.lt.s32.totalorder %s18, 3
      %p217 = pnand %p215, %p216
      %p218 = pneg %p217
      // Predicated region
      $region33: #{tpu_custom_call.1} parent=5 // pred_check
        _
      $region34: #{tpu_custom_call.1} parent=5 // pred_check_branch
        %220 = sbr.rel (%p217) target = $region36
      $region35: #{tpu_custom_call.1} parent=5 // pred_region
        %s221 = ssub.s32 %s18, 1
        %s222 = sand.u32 %s31, 1
        %s223 = scalar_lea.sflag [#allocation3], %s222
        %s224 = sand.u32 %s31, 1
        %s225 = smul.addr %s224, 32
        %s226 = scalar_lea.vmem [#allocation2], %s225
        // Predicated region
        $region37: #{tpu_custom_call.1} parent=35 // pred_check
          %p227 = pneg %p44
        $region38: #{tpu_custom_call.1} parent=35 // pred_check_branch
          %229 = sbr.rel (%p227) target = $region40
        $region39: #{tpu_custom_call.1} parent=35 // pred_region
          %231 = dma.done %s223, 512
        $region40: #{tpu_custom_call.1} parent=35 // pred_fallthru
          _
        // Predicated region
        $region41: #{tpu_custom_call.1} parent=35 // pred_check
          %p232 = pneg %p65
        $region42: #{tpu_custom_call.1} parent=35 // pred_check_branch
          %234 = sbr.rel (%p232) target = $region44
        $region43: #{tpu_custom_call.1} parent=35 // pred_region
          %236 = dma.done [#allocation6], 3072
        $region44: #{tpu_custom_call.1} parent=35 // pred_fallthru
          _
        // Predicated region
        $region45: #{tpu_custom_call.1} parent=35 // pred_check
          %p237 = pneg %p86
        $region46: #{tpu_custom_call.1} parent=35 // pred_check_branch
          %239 = sbr.rel (%p237) target = $region48
        $region47: #{tpu_custom_call.1} parent=35 // pred_region
          %241 = dma.done [#allocation6], 3072
        $region48: #{tpu_custom_call.1} parent=35 // pred_fallthru
          _
        // Predicated region
        $region49: #{tpu_custom_call.1} parent=35 // pred_check
          %p242 = pneg %p107
        $region50: #{tpu_custom_call.1} parent=35 // pred_check_branch
          %244 = sbr.rel (%p242) target = $region52
        $region51: #{tpu_custom_call.1} parent=35 // pred_region
          %246 = dma.done [#allocation9], 64
        $region52: #{tpu_custom_call.1} parent=35 // pred_fallthru
          _
        %s247 = sand.u32 %s31, 1
        %s248 = scalar_lea.sflag [#allocation3], %s247
        %s249 = sand.u32 %s31, 1
        %s250 = smul.addr %s249, 32
        %s251 = scalar_lea.vmem [#allocation2], %s250
        %p252 = pneg %p44
        %p253 = pneg %p41
        %p254 = pneg %p65
        %p255 = pneg %p62
        %p256 = pneg %p86
        %p257 = pneg %p83
        %p258 = pneg %p107
        %p259 = pneg %p104
        %p260 = pneg %p133
        %p261 = pneg %p130
        %s262 = sand.u32 %s120, 1
        %s263 = scalar_lea.sflag [#allocation4], %s262
        %s264 = sand.u32 %s120, 1
        %s265 = smul.addr %s264, 32
        %s266 = scalar_lea.vmem [#allocation10], %s265
        %s267 = smul.u32 2, %s23
        %s268 = smul.u32 2, %s23
        %v269 = vld [vmem:[%s226] sm:$0xff]
        %v270 = vld [vmem:[%s226 + $0x8] sm:$0xff]
        %v271 = vld [vmem:[%s226 + $0x10] sm:$0xff]
        %v272 = vld [vmem:[%s226 + $0x18] sm:$0xff]
        %v273 = vlaneseq
        %v274 = vshrl.u32 %v273, 7
        %v275 = vadd.s32 %v274, 8
        %vm276 = vcmp.gt.s32.totalorder %v274, 0
        %vm277 = vcmp.gt.s32.totalorder %v275, 0
        %vm278 = vcmp.lt.s32.totalorder %v274, 15
        %vm279 = vcmp.lt.s32.totalorder %v275, 15
        %v280 = vld [vmem:[#allocation8] sm:$0x1]
        %v281 = vld [vmem:[#allocation8 + $0x1] sm:$0x1]
        %v282 = vld [vmem:[#allocation8 + $0x2] sm:$0x1]
        %v283 = vld [vmem:[#allocation8 + $0x3] sm:$0x1]
        %v284 = vrot.slane %v269, 7
        %v285 = vrot.slane %v270, 7
        %v286 = vrot.slane %v271, 7
        %v287 = vrot.slane %v272, 7
        %vm288 = vcmp.lt.s32.totalorder %v274, 1
        %v289 = vsel %vm288, %v286, %v287
        %v290 = vsel %vm288, %v285, %v286
        %v291 = vsel %vm288, %v284, %v285
        %v292 = vsel %vm288, %v287, %v284
        %v293 = vsel %vm276, %v292, 0.0
        %v294 = vsel %vm277, %v291, 0.0
        %v295 = vsel %vm276, %v290, 0.0
        %v296 = vsel %vm277, %v289, 0.0
        %v297 = vrot.slane %v269, 1
        %v298 = vrot.slane %v270, 1
        %v299 = vrot.slane %v271, 1
        %v300 = vrot.slane %v272, 1
        %vm301 = vcmp.lt.s32.totalorder %v274, 7
        %v302 = vsel %vm301, %v299, %v300
        %v303 = vsel %vm301, %v298, %v299
        %v304 = vsel %vm301, %v297, %v298
        %v305 = vsel %vm301, %v300, %v297
        %v306 = vsel %vm278, %v304, 0.0
        %v307 = vsel %vm279, %v303, 0.0
        %v308 = vsel %vm278, %v302, 0.0
        %v309 = vsel %vm279, %v305, 0.0
        %v310 = vpack.c.bf16 %v294, %v293
        %v311 = vpack.c.bf16 %v270, %v269
        %v312 = vpack.c.bf16 %v307, %v306
        %v313 = vpack.c.bf16 %v296, %v295
        %v314 = vpack.c.bf16 %v272, %v271
        %v315 = vpack.c.bf16 %v309, %v308
        %v316 = vld [vmem:[#allocation5] sm:$0xf]
        %v317 = vld [vmem:[#allocation5 + $0x4] sm:$0xf]
        %v318 = vld [vmem:[#allocation5 + $0x8] sm:$0xf]
        %v319 = vld [vmem:[#allocation5 + $0xc] sm:$0xf]
        %v320 = vld [vmem:[#allocation5 + $0x10] sm:$0xf]
        %v321 = vld [vmem:[#allocation5 + $0x14] sm:$0xf]
        %v322 = vld [vmem:[#allocation5 + $0x18] sm:$0xf]
        %v323 = vld [vmem:[#allocation5 + $0x1c] sm:$0xf]
        %v324 = vld [vmem:[#allocation5 + $0x20] sm:$0xf]
        %v325 = vld [vmem:[#allocation5 + $0x24] sm:$0xf]
        %v326 = vld [vmem:[#allocation5 + $0x28] sm:$0xf]
        %v327 = vld [vmem:[#allocation5 + $0x2c] sm:$0xf]
        %v328 = vld [vmem:[#allocation5 + $0x30] sm:$0xf]
        %v329 = vld [vmem:[#allocation5 + $0x34] sm:$0xf]
        %v330 = vld [vmem:[#allocation5 + $0x38] sm:$0xf]
        %v331 = vld [vmem:[#allocation5 + $0x3c] sm:$0xf]
        %v332 = vld [vmem:[#allocation5 + $0x40] sm:$0xf]
        %v333 = vld [vmem:[#allocation5 + $0x44] sm:$0xf]
        %v334 = vld [vmem:[#allocation5 + $0x48] sm:$0xf]
        %v335 = vld [vmem:[#allocation5 + $0x4c] sm:$0xf]
        %v336 = vld [vmem:[#allocation5 + $0x50] sm:$0xf]
        %v337 = vld [vmem:[#allocation5 + $0x54] sm:$0xf]
        %v338 = vld [vmem:[#allocation5 + $0x58] sm:$0xf]
        %v339 = vld [vmem:[#allocation5 + $0x5c] sm:$0xf]
        %v340 = vld [vmem:[#allocation5 + $0x60] sm:$0xf]
        %v341 = vld [vmem:[#allocation5 + $0x64] sm:$0xf]
        %v342 = vld [vmem:[#allocation5 + $0x68] sm:$0xf]
        %v343 = vld [vmem:[#allocation5 + $0x6c] sm:$0xf]
        %v344 = vld [vmem:[#allocation5 + $0x70] sm:$0xf]
        %v345 = vld [vmem:[#allocation5 + $0x74] sm:$0xf]
        %v346 = vld [vmem:[#allocation5 + $0x78] sm:$0xf]
        %v347 = vld [vmem:[#allocation5 + $0x7c] sm:$0xf]
        %v348 = vld [vmem:[#allocation5 + $0x80] sm:$0xf]
        %v349 = vld [vmem:[#allocation5 + $0x84] sm:$0xf]
        %v350 = vld [vmem:[#allocation5 + $0x88] sm:$0xf]
        %v351 = vld [vmem:[#allocation5 + $0x8c] sm:$0xf]
        %v352 = vld [vmem:[#allocation5 + $0x90] sm:$0xf]
        %v353 = vld [vmem:[#allocation5 + $0x94] sm:$0xf]
        %v354 = vld [vmem:[#allocation5 + $0x98] sm:$0xf]
        %v355 = vld [vmem:[#allocation5 + $0x9c] sm:$0xf]
        %v356 = vld [vmem:[#allocation5 + $0xa0] sm:$0xf]
        %v357 = vld [vmem:[#allocation5 + $0xa4] sm:$0xf]
        %v358 = vld [vmem:[#allocation5 + $0xa8] sm:$0xf]
        %v359 = vld [vmem:[#allocation5 + $0xac] sm:$0xf]
        %v360 = vld [vmem:[#allocation5 + $0xb0] sm:$0xf]
        %v361 = vld [vmem:[#allocation5 + $0xb4] sm:$0xf]
        %v362 = vld [vmem:[#allocation5 + $0xb8] sm:$0xf]
        %v363 = vld [vmem:[#allocation5 + $0xbc] sm:$0xf]
        %v412 = vunpack.c.l.b16 %v316
        %v413 = vunpack.c.l.b16 %v317
        %v414 = vunpack.c.l.b16 %v318
        %v415 = vunpack.c.l.b16 %v319
        %v416 = vunpack.c.l.b16 %v320
        %v417 = vunpack.c.l.b16 %v321
        %v418 = vunpack.c.l.b16 %v322
        %v419 = vunpack.c.l.b16 %v323
        %v420 = vunpack.c.l.b16 %v324
        %v421 = vunpack.c.l.b16 %v325
        %v422 = vunpack.c.l.b16 %v326
        %v423 = vunpack.c.l.b16 %v327
        %v424 = vunpack.c.l.b16 %v328
        %v425 = vunpack.c.l.b16 %v329
        %v426 = vunpack.c.l.b16 %v330
        %v427 = vunpack.c.l.b16 %v331
        %v428 = vunpack.c.l.b16 %v332
        %v429 = vunpack.c.l.b16 %v333
        %v430 = vunpack.c.l.b16 %v334
        %v431 = vunpack.c.l.b16 %v335
        %v432 = vunpack.c.l.b16 %v336
        %v433 = vunpack.c.l.b16 %v337
        %v434 = vunpack.c.l.b16 %v338
        %v435 = vunpack.c.l.b16 %v339
        %v436 = vunpack.c.l.b16 %v340
        %v437 = vunpack.c.l.b16 %v341
        %v438 = vunpack.c.l.b16 %v342
        %v439 = vunpack.c.l.b16 %v343
        %v440 = vunpack.c.l.b16 %v344
        %v441 = vunpack.c.l.b16 %v345
        %v442 = vunpack.c.l.b16 %v346
        %v443 = vunpack.c.l.b16 %v347
        %v444 = vunpack.c.l.b16 %v348
        %v445 = vunpack.c.l.b16 %v349
        %v446 = vunpack.c.l.b16 %v350
        %v447 = vunpack.c.l.b16 %v351
        %v448 = vunpack.c.l.b16 %v352
        %v449 = vunpack.c.l.b16 %v353
        %v450 = vunpack.c.l.b16 %v354
        %v451 = vunpack.c.l.b16 %v355
        %v452 = vunpack.c.l.b16 %v356
        %v453 = vunpack.c.l.b16 %v357
        %v454 = vunpack.c.l.b16 %v358
        %v455 = vunpack.c.l.b16 %v359
        %v456 = vunpack.c.l.b16 %v360
        %v457 = vunpack.c.l.b16 %v361
        %v458 = vunpack.c.l.b16 %v362
        %v459 = vunpack.c.l.b16 %v363
        %v460 = vpack.c.b16 %v413, %v412
        %v461 = vpack.c.b16 %v415, %v414
        %v462 = vpack.c.b16 %v417, %v416
        %v463 = vpack.c.b16 %v419, %v418
        %v464 = vpack.c.b16 %v421, %v420
        %v465 = vpack.c.b16 %v423, %v422
        %v466 = vpack.c.b16 %v425, %v424
        %v467 = vpack.c.b16 %v427, %v426
        %v468 = vpack.c.b16 %v429, %v428
        %v469 = vpack.c.b16 %v431, %v430
        %v470 = vpack.c.b16 %v433, %v432
        %v471 = vpack.c.b16 %v435, %v434
        %v472 = vpack.c.b16 %v437, %v436
        %v473 = vpack.c.b16 %v439, %v438
        %v474 = vpack.c.b16 %v441, %v440
        %v475 = vpack.c.b16 %v443, %v442
        %v476 = vpack.c.b16 %v445, %v444
        %v477 = vpack.c.b16 %v447, %v446
        %v478 = vpack.c.b16 %v449, %v448
        %v479 = vpack.c.b16 %v451, %v450
        %v480 = vpack.c.b16 %v453, %v452
        %v481 = vpack.c.b16 %v455, %v454
        %v482 = vpack.c.b16 %v457, %v456
        %v483 = vpack.c.b16 %v459, %v458
        %508 = vmatpush.bf16.msra.mxu0 %v467
        %509 = vmatpush.bf16.msra.mxu0 %v466
        %510 = vmatpush.bf16.msra.mxu0 %v465
        %511 = vmatpush.bf16.msra.mxu0 %v464
        %512 = vmatpush.bf16.msra.mxu0 %v463
        %513 = vmatpush.bf16.msra.mxu0 %v462
        %514 = vmatpush.bf16.msra.mxu0 %v461
        %515 = vmatpush.bf16.msra.mxu0 %v460
        %516 = vmatmul.bf16.gmra.mxu0 %v310
        %v517 = vpop.f32.mrf.mxu0
        %v518 = vadd.f32 0.0, %v517
        %v519 = vpop.f32.mrf.mxu0
        %v520 = vadd.f32 0.0, %v519
        %521 = vmatmul.bf16.gmra.mxu0 %v313
        %v522 = vpop.f32.mrf.mxu0
        %v523 = vadd.f32 0.0, %v522
        %v524 = vpop.f32.mrf.mxu0
        %v525 = vadd.f32 0.0, %v524
        %526 = vdwg.mxu0
        %527 = vmatpush.bf16.msra.mxu0 %v475
        %528 = vmatpush.bf16.msra.mxu0 %v474
        %529 = vmatpush.bf16.msra.mxu0 %v473
        %530 = vmatpush.bf16.msra.mxu0 %v472
        %531 = vmatpush.bf16.msra.mxu0 %v471
        %532 = vmatpush.bf16.msra.mxu0 %v470
        %533 = vmatpush.bf16.msra.mxu0 %v469
        %534 = vmatpush.bf16.msra.mxu0 %v468
        %535 = vmatmul.bf16.gmra.mxu0 %v311
        %v536 = vpop.f32.mrf.mxu0
        %v537 = vadd.f32 %v518, %v536
        %v538 = vpop.f32.mrf.mxu0
        %v539 = vadd.f32 %v520, %v538
        %540 = vmatmul.bf16.gmra.mxu0 %v314
        %v541 = vpop.f32.mrf.mxu0
        %v542 = vadd.f32 %v523, %v541
        %v543 = vpop.f32.mrf.mxu0
        %v544 = vadd.f32 %v525, %v543
        %545 = vdwg.mxu0
        %546 = vmatpush.bf16.msra.mxu0 %v483
        %547 = vmatpush.bf16.msra.mxu0 %v482
        %548 = vmatpush.bf16.msra.mxu0 %v481
        %549 = vmatpush.bf16.msra.mxu0 %v480
        %550 = vmatpush.bf16.msra.mxu0 %v479
        %551 = vmatpush.bf16.msra.mxu0 %v478
        %552 = vmatpush.bf16.msra.mxu0 %v477
        %553 = vmatpush.bf16.msra.mxu0 %v476
        %554 = vmatmul.bf16.gmra.mxu0 %v312
        %v555 = vpop.f32.mrf.mxu0
        %v556 = vadd.f32 %v537, %v555
        %v557 = vpop.f32.mrf.mxu0
        %v558 = vadd.f32 %v539, %v557
        %559 = vmatmul.bf16.gmra.mxu0 %v315
        %v560 = vpop.f32.mrf.mxu0
        %v561 = vadd.f32 %v542, %v560
        %v562 = vpop.f32.mrf.mxu0
        %v563 = vadd.f32 %v544, %v562
        %564 = vdwg.mxu0
        %v565 = vperm.slane %v280, 0
        %v566 = vmul.f32 %v556, %v565
        %v567 = vmul.f32 %v558, %v565
        %v568 = vmul.f32 %v561, %v565
        %v569 = vmul.f32 %v563, %v565
        %v570 = vperm.slane %v281, 0
        %v571 = vadd.f32 %v566, %v570
        %v572 = vadd.f32 %v567, %v570
        %v573 = vadd.f32 %v568, %v570
        %v574 = vadd.f32 %v569, %v570
        %v575 = vmax.f32 %v571, 0.0
        %v576 = vmax.f32 %v572, 0.0
        %v577 = vmax.f32 %v573, 0.0
        %v578 = vmax.f32 %v574, 0.0
        %v579 = vrot.slane %v575, 7
        %v580 = vrot.slane %v576, 7
        %v581 = vrot.slane %v577, 7
        %v582 = vrot.slane %v578, 7
        %v583 = vsel %vm288, %v581, %v582
        %v584 = vsel %vm288, %v580, %v581
        %v585 = vsel %vm288, %v579, %v580
        %v586 = vsel %vm288, %v582, %v579
        %v587 = vsel %vm276, %v586, 0.0
        %v588 = vsel %vm277, %v585, 0.0
        %v589 = vsel %vm276, %v584, 0.0
        %v590 = vsel %vm277, %v583, 0.0
        %v591 = vrot.slane %v575, 1
        %v592 = vrot.slane %v576, 1
        %v593 = vrot.slane %v577, 1
        %v594 = vrot.slane %v578, 1
        %v595 = vsel %vm301, %v593, %v594
        %v596 = vsel %vm301, %v592, %v593
        %v597 = vsel %vm301, %v591, %v592
        %v598 = vsel %vm301, %v594, %v591
        %v599 = vsel %vm278, %v597, 0.0
        %v600 = vsel %vm279, %v596, 0.0
        %v601 = vsel %vm278, %v595, 0.0
        %v602 = vsel %vm279, %v598, 0.0
        %v603 = vpack.c.bf16 %v588, %v587
        %v604 = vpack.c.bf16 %v576, %v575
        %v605 = vpack.c.bf16 %v600, %v599
        %v606 = vpack.c.bf16 %v590, %v589
        %v607 = vpack.c.bf16 %v578, %v577
        %v608 = vpack.c.bf16 %v602, %v601
        %v609 = vld [vmem:[#allocation7] sm:$0xf]
        %v610 = vld [vmem:[#allocation7 + $0x4] sm:$0xf]
        %v611 = vld [vmem:[#allocation7 + $0x8] sm:$0xf]
        %v612 = vld [vmem:[#allocation7 + $0xc] sm:$0xf]
        %v613 = vld [vmem:[#allocation7 + $0x10] sm:$0xf]
        %v614 = vld [vmem:[#allocation7 + $0x14] sm:$0xf]
        %v615 = vld [vmem:[#allocation7 + $0x18] sm:$0xf]
        %v616 = vld [vmem:[#allocation7 + $0x1c] sm:$0xf]
        %v617 = vld [vmem:[#allocation7 + $0x20] sm:$0xf]
        %v618 = vld [vmem:[#allocation7 + $0x24] sm:$0xf]
        %v619 = vld [vmem:[#allocation7 + $0x28] sm:$0xf]
        %v620 = vld [vmem:[#allocation7 + $0x2c] sm:$0xf]
        %v621 = vld [vmem:[#allocation7 + $0x30] sm:$0xf]
        %v622 = vld [vmem:[#allocation7 + $0x34] sm:$0xf]
        %v623 = vld [vmem:[#allocation7 + $0x38] sm:$0xf]
        %v624 = vld [vmem:[#allocation7 + $0x3c] sm:$0xf]
        %v625 = vld [vmem:[#allocation7 + $0x40] sm:$0xf]
        %v626 = vld [vmem:[#allocation7 + $0x44] sm:$0xf]
        %v627 = vld [vmem:[#allocation7 + $0x48] sm:$0xf]
        %v628 = vld [vmem:[#allocation7 + $0x4c] sm:$0xf]
        %v629 = vld [vmem:[#allocation7 + $0x50] sm:$0xf]
        %v630 = vld [vmem:[#allocation7 + $0x54] sm:$0xf]
        %v631 = vld [vmem:[#allocation7 + $0x58] sm:$0xf]
        %v632 = vld [vmem:[#allocation7 + $0x5c] sm:$0xf]
        %v633 = vld [vmem:[#allocation7 + $0x60] sm:$0xf]
        %v634 = vld [vmem:[#allocation7 + $0x64] sm:$0xf]
        %v635 = vld [vmem:[#allocation7 + $0x68] sm:$0xf]
        %v636 = vld [vmem:[#allocation7 + $0x6c] sm:$0xf]
        %v637 = vld [vmem:[#allocation7 + $0x70] sm:$0xf]
        %v638 = vld [vmem:[#allocation7 + $0x74] sm:$0xf]
        %v639 = vld [vmem:[#allocation7 + $0x78] sm:$0xf]
        %v640 = vld [vmem:[#allocation7 + $0x7c] sm:$0xf]
        %v641 = vld [vmem:[#allocation7 + $0x80] sm:$0xf]
        %v642 = vld [vmem:[#allocation7 + $0x84] sm:$0xf]
        %v643 = vld [vmem:[#allocation7 + $0x88] sm:$0xf]
        %v644 = vld [vmem:[#allocation7 + $0x8c] sm:$0xf]
        %v645 = vld [vmem:[#allocation7 + $0x90] sm:$0xf]
        %v646 = vld [vmem:[#allocation7 + $0x94] sm:$0xf]
        %v647 = vld [vmem:[#allocation7 + $0x98] sm:$0xf]
        %v648 = vld [vmem:[#allocation7 + $0x9c] sm:$0xf]
        %v649 = vld [vmem:[#allocation7 + $0xa0] sm:$0xf]
        %v650 = vld [vmem:[#allocation7 + $0xa4] sm:$0xf]
        %v651 = vld [vmem:[#allocation7 + $0xa8] sm:$0xf]
        %v652 = vld [vmem:[#allocation7 + $0xac] sm:$0xf]
        %v653 = vld [vmem:[#allocation7 + $0xb0] sm:$0xf]
        %v654 = vld [vmem:[#allocation7 + $0xb4] sm:$0xf]
        %v655 = vld [vmem:[#allocation7 + $0xb8] sm:$0xf]
        %v656 = vld [vmem:[#allocation7 + $0xbc] sm:$0xf]
        %v705 = vunpack.c.l.b16 %v609
        %v706 = vunpack.c.l.b16 %v610
        %v707 = vunpack.c.l.b16 %v611
        %v708 = vunpack.c.l.b16 %v612
        %v709 = vunpack.c.l.b16 %v613
        %v710 = vunpack.c.l.b16 %v614
        %v711 = vunpack.c.l.b16 %v615
        %v712 = vunpack.c.l.b16 %v616
        %v713 = vunpack.c.l.b16 %v617
        %v714 = vunpack.c.l.b16 %v618
        %v715 = vunpack.c.l.b16 %v619
        %v716 = vunpack.c.l.b16 %v620
        %v717 = vunpack.c.l.b16 %v621
        %v718 = vunpack.c.l.b16 %v622
        %v719 = vunpack.c.l.b16 %v623
        %v720 = vunpack.c.l.b16 %v624
        %v721 = vunpack.c.l.b16 %v625
        %v722 = vunpack.c.l.b16 %v626
        %v723 = vunpack.c.l.b16 %v627
        %v724 = vunpack.c.l.b16 %v628
        %v725 = vunpack.c.l.b16 %v629
        %v726 = vunpack.c.l.b16 %v630
        %v727 = vunpack.c.l.b16 %v631
        %v728 = vunpack.c.l.b16 %v632
        %v729 = vunpack.c.l.b16 %v633
        %v730 = vunpack.c.l.b16 %v634
        %v731 = vunpack.c.l.b16 %v635
        %v732 = vunpack.c.l.b16 %v636
        %v733 = vunpack.c.l.b16 %v637
        %v734 = vunpack.c.l.b16 %v638
        %v735 = vunpack.c.l.b16 %v639
        %v736 = vunpack.c.l.b16 %v640
        %v737 = vunpack.c.l.b16 %v641
        %v738 = vunpack.c.l.b16 %v642
        %v739 = vunpack.c.l.b16 %v643
        %v740 = vunpack.c.l.b16 %v644
        %v741 = vunpack.c.l.b16 %v645
        %v742 = vunpack.c.l.b16 %v646
        %v743 = vunpack.c.l.b16 %v647
        %v744 = vunpack.c.l.b16 %v648
        %v745 = vunpack.c.l.b16 %v649
        %v746 = vunpack.c.l.b16 %v650
        %v747 = vunpack.c.l.b16 %v651
        %v748 = vunpack.c.l.b16 %v652
        %v749 = vunpack.c.l.b16 %v653
        %v750 = vunpack.c.l.b16 %v654
        %v751 = vunpack.c.l.b16 %v655
        %v752 = vunpack.c.l.b16 %v656
        %v753 = vpack.c.b16 %v706, %v705
        %v754 = vpack.c.b16 %v708, %v707
        %v755 = vpack.c.b16 %v710, %v709
        %v756 = vpack.c.b16 %v712, %v711
        %v757 = vpack.c.b16 %v714, %v713
        %v758 = vpack.c.b16 %v716, %v715
        %v759 = vpack.c.b16 %v718, %v717
        %v760 = vpack.c.b16 %v720, %v719
        %v761 = vpack.c.b16 %v722, %v721
        %v762 = vpack.c.b16 %v724, %v723
        %v763 = vpack.c.b16 %v726, %v725
        %v764 = vpack.c.b16 %v728, %v727
        %v765 = vpack.c.b16 %v730, %v729
        %v766 = vpack.c.b16 %v732, %v731
        %v767 = vpack.c.b16 %v734, %v733
        %v768 = vpack.c.b16 %v736, %v735
        %v769 = vpack.c.b16 %v738, %v737
        %v770 = vpack.c.b16 %v740, %v739
        %v771 = vpack.c.b16 %v742, %v741
        %v772 = vpack.c.b16 %v744, %v743
        %v773 = vpack.c.b16 %v746, %v745
        %v774 = vpack.c.b16 %v748, %v747
        %v775 = vpack.c.b16 %v750, %v749
        %v776 = vpack.c.b16 %v752, %v751
        %801 = vmatpush.bf16.msra.mxu0 %v760
        %802 = vmatpush.bf16.msra.mxu0 %v759
        %803 = vmatpush.bf16.msra.mxu0 %v758
        %804 = vmatpush.bf16.msra.mxu0 %v757
        %805 = vmatpush.bf16.msra.mxu0 %v756
        %806 = vmatpush.bf16.msra.mxu0 %v755
        %807 = vmatpush.bf16.msra.mxu0 %v754
        %808 = vmatpush.bf16.msra.mxu0 %v753
        %809 = vmatmul.bf16.gmra.mxu0 %v603
        %v810 = vpop.f32.mrf.mxu0
        %v811 = vadd.f32 0.0, %v810
        %v812 = vpop.f32.mrf.mxu0
        %v813 = vadd.f32 0.0, %v812
        %814 = vmatmul.bf16.gmra.mxu0 %v606
        %v815 = vpop.f32.mrf.mxu0
        %v816 = vadd.f32 0.0, %v815
        %v817 = vpop.f32.mrf.mxu0
        %v818 = vadd.f32 0.0, %v817
        %819 = vdwg.mxu0
        %820 = vmatpush.bf16.msra.mxu0 %v768
        %821 = vmatpush.bf16.msra.mxu0 %v767
        %822 = vmatpush.bf16.msra.mxu0 %v766
        %823 = vmatpush.bf16.msra.mxu0 %v765
        %824 = vmatpush.bf16.msra.mxu0 %v764
        %825 = vmatpush.bf16.msra.mxu0 %v763
        %826 = vmatpush.bf16.msra.mxu0 %v762
        %827 = vmatpush.bf16.msra.mxu0 %v761
        %828 = vmatmul.bf16.gmra.mxu0 %v604
        %v829 = vpop.f32.mrf.mxu0
        %v830 = vadd.f32 %v811, %v829
        %v831 = vpop.f32.mrf.mxu0
        %v832 = vadd.f32 %v813, %v831
        %833 = vmatmul.bf16.gmra.mxu0 %v607
        %v834 = vpop.f32.mrf.mxu0
        %v835 = vadd.f32 %v816, %v834
        %v836 = vpop.f32.mrf.mxu0
        %v837 = vadd.f32 %v818, %v836
        %838 = vdwg.mxu0
        %839 = vmatpush.bf16.msra.mxu0 %v776
        %840 = vmatpush.bf16.msra.mxu0 %v775
        %841 = vmatpush.bf16.msra.mxu0 %v774
        %842 = vmatpush.bf16.msra.mxu0 %v773
        %843 = vmatpush.bf16.msra.mxu0 %v772
        %844 = vmatpush.bf16.msra.mxu0 %v771
        %845 = vmatpush.bf16.msra.mxu0 %v770
        %846 = vmatpush.bf16.msra.mxu0 %v769
        %847 = vmatmul.bf16.gmra.mxu0 %v605
        %v848 = vpop.f32.mrf.mxu0
        %v849 = vadd.f32 %v830, %v848
        %v850 = vpop.f32.mrf.mxu0
        %v851 = vadd.f32 %v832, %v850
        %852 = vmatmul.bf16.gmra.mxu0 %v608
        %v853 = vpop.f32.mrf.mxu0
        %v854 = vadd.f32 %v835, %v853
        %v855 = vpop.f32.mrf.mxu0
        %v856 = vadd.f32 %v837, %v855
        %857 = vdwg.mxu0
        %v858 = vperm.slane %v282, 0
        %v859 = vmul.f32 %v849, %v858
        %v860 = vmul.f32 %v851, %v858
        %v861 = vmul.f32 %v854, %v858
        %v862 = vmul.f32 %v856, %v858
        %v863 = vperm.slane %v283, 0
        %v864 = vadd.f32 %v859, %v863
        %v865 = vadd.f32 %v860, %v863
        %v866 = vadd.f32 %v861, %v863
        %v867 = vadd.f32 %v862, %v863
        %v868 = vadd.f32 %v864, %v269
        %v869 = vadd.f32 %v865, %v270
        %v870 = vadd.f32 %v866, %v271
        %v871 = vadd.f32 %v867, %v272
        %v872 = vmax.f32 %v868, 0.0
        %v873 = vmax.f32 %v869, 0.0
        %v874 = vmax.f32 %v870, 0.0
        %v875 = vmax.f32 %v871, 0.0
        %876 = vst [vmem:[%s266] sm:$0xff] %v872
        %877 = vst [vmem:[%s266 + $0x8] sm:$0xff] %v873
        %878 = vst [vmem:[%s266 + $0x10] sm:$0xff] %v874
        %879 = vst [vmem:[%s266 + $0x18] sm:$0xff] %v875
        %s880 = sand.u32 %s120, 1
        %s881 = scalar_lea.sflag [#allocation4], %s880
        %s882 = sand.u32 %s120, 1
        %s883 = smul.addr %s882, 32
        %s884 = scalar_lea.vmem [#allocation10], %s883
        // Predicated region
        $region53: #{tpu_custom_call.1} parent=35 // pred_check
          %p885 = pneg %p130
        $region54: #{tpu_custom_call.1} parent=35 // pred_check_branch
          %887 = sbr.rel (%p885) target = $region56
        $region55: #{tpu_custom_call.1} parent=35 // pred_region
          %s888 = smul.u32 2, %s23
          %890 = vsyncadd %s881, 0
          %s891 = smul.addr %s888, 2
          %s892 = smul.addr %s891, 8
          %s893 = scalar_lea.hbm %s4, %s892
          %s894 = sshll.u32 %s884, 4
          %s895 = int_to_ptr.vmem [resolvable:$true] %s894
          %s896 = sshll.u32 %s893, 4
          %s897 = int_to_ptr.hbm [resolvable:$true] %s896
          %902 = dma.vmem_to_hbm [thread:$0]  %s895, 512, %s897, %s881, 128, 128, 8
        $region56: #{tpu_custom_call.1} parent=35 // pred_fallthru
          _
      $region36: #{tpu_custom_call.1} parent=5 // pred_fallthru
        _
      %p903 = scmp.le.s32.totalorder 2, %s18
      // Predicated region
      $region57: #{tpu_custom_call.1} parent=5 // pred_check
        %p904 = pneg %p903
      $region58: #{tpu_custom_call.1} parent=5 // pred_check_branch
        %906 = sbr.rel (%p904) target = $region60
      $region59: #{tpu_custom_call.1} parent=5 // pred_region
        %s907 = ssub.s32 %s18, 2
        // Predicated region
        $region61: #{tpu_custom_call.1} parent=59 // pred_check
          %p908 = pneg %p136
        $region62: #{tpu_custom_call.1} parent=59 // pred_check_branch
          %910 = sbr.rel (%p908) target = $region64
        $region63: #{tpu_custom_call.1} parent=59 // pred_region
          %s911 = sand.u32 %s121, 1
          %s912 = scalar_lea.sflag [#allocation4], %s911
          %s913 = sand.u32 %s121, 1
          %s914 = smul.addr %s913, 32
          %s915 = scalar_lea.vmem [#allocation10], %s914
          %917 = dma.done %s912, 512
        $region64: #{tpu_custom_call.1} parent=59 // pred_fallthru
          _
      $region60: #{tpu_custom_call.1} parent=5 // pred_fallthru
        _
    $region6: #{tpu_custom_call.1} parent=1 // loop_footer
      %s22 = sadd.s32 1, %s18
    $region7: #{tpu_custom_call.1} parent=1 // loop_footer_branch
      %17 = sbr.rel target = $region3
    $region8: #{tpu_custom_call.1} parent=1 // loop_exit
      _
    %918 = vsyncpa [#allocation3], 1
    %s919 = scalar_lea.sflag [#allocation3], 1
    %920 = vsyncpa %s919, 1
    %921 = vsyncpa [#allocation6], 1
    %922 = vsyncpa [#allocation9], 1
    %923 = vsyncpa [#allocation4], 1
    %s924 = scalar_lea.sflag [#allocation4], 1
    %925 = vsyncpa %s924, 1

</llo_original>
